<compile_context>
chip_gen: v7x
topology: tpu7x:2x2x1
jax: 0.10.0
libtpu: 0.0.40
codegen_flags: <defaults>
</compile_context>

<pallas_src>
import math
from functools import partial

import jax
import jax.numpy as jnp
from jax.experimental import pallas as pl
from jax.experimental.pallas import tpu as pltpu

MINLOGSTD = -20.0
MAXLOGSTD = 2.0
_HALF_LOG_2PI = 0.5 * math.log(2.0 * math.pi)
_TWO_LOG_2 = 2.0 * math.log(2.0)


def _round_up(x, m):
    return ((x + m - 1) // m) * m


# ----------------------------- kernels ------------------------------------


def _trunk(obs_ref, w_ref, b_ref, *, OP, WP, A):
    """Shared MLP trunk + fused mu/log_std head. Returns (mu, clamped log_std)."""
    x = obs_ref[...]
    w1 = w_ref[0:OP, :]                    # [OP, WP]   (obdim -> h1, zero-padded)
    w2 = w_ref[OP:OP + WP, :]              # [WP, WP]   (h1 -> h2, zero-padded)
    wh = w_ref[OP + WP:OP + 2 * WP, :]     # [WP, WP]   fused heads (h2 -> [mu|log_std])
    b1 = b_ref[0:1, :]
    b2 = b_ref[1:2, :]
    bh = b_ref[2:3, :]

    h = jnp.dot(x, w1, preferred_element_type=jnp.float32) + b1
    h = jnp.maximum(h, 0.0)
    h = jnp.dot(h, w2, preferred_element_type=jnp.float32) + b2
    h = jnp.maximum(h, 0.0)
    head = jnp.dot(h, wh, preferred_element_type=jnp.float32) + bh   # [TB, WP]

    mu = head[:, 0:A]
    log_std = jnp.clip(head[:, A:2 * A], MINLOGSTD, MAXLOGSTD)
    return mu, log_std


def _stochastic_kernel(obs_ref, eps_ref, w_ref, b_ref, out_ref, *, OP, WP, A):
    mu, log_std = _trunk(obs_ref, w_ref, b_ref, OP=OP, WP=WP, A=A)
    std = jnp.exp(log_std)
    eps = eps_ref[...]
    action = mu + std * eps                       # reparameterized rsample
    # Normal(mu, std).log_prob(action): z = (action - mu)/std == eps exactly,
    # so the divide is skipped entirely.
    log_prob = -0.5 * eps * eps - log_std - _HALF_LOG_2PI
    # tanh-squash correction exactly as written in the PyTorch reference.
    log_prob = log_prob - (_TWO_LOG_2 - action - jax.nn.softplus(-2.0 * action))
    # Single packed output slab: lanes [0:A) = tanh(action), [A:2A) = log_prob.
    out_ref[:, 0:A] = jnp.tanh(action)
    out_ref[:, A:2 * A] = log_prob


def _deterministic_kernel(obs_ref, w_ref, b_ref, out_ref, *, OP, WP, A):
    mu, _ = _trunk(obs_ref, w_ref, b_ref, OP=OP, WP=WP, A=A)
    out_ref[...] = jnp.tanh(mu)


# ----------------------------- wrapper -------------------------------------


def _batch_tile(B):
    # Largest tile in {512, 256, 128} that evenly divides a large batch; the
    # weights stay VMEM-resident so bigger tiles just amortize per-step
    # overhead. Otherwise fall back to a single tile (B itself).
    for t in (512, 256, 128):
        if B > t and B % t == 0:
            return t
    return B


def gaussian_actor_forward(obs, packed, eps=None, deterministic=False):
    """GaussianActor forward pass via Pallas kernels.

    Returns (tanh(action), log_prob) on the stochastic path (log_prob is
    elementwise per action dim, matching the PyTorch module), or
    (tanh(mu), None) when deterministic=True.
    """
    B = obs.shape[0]
    A, OP, WP, obdim = packed["A"], packed["OP"], packed["WP"], packed["obdim"]
    w, b = packed["w"], packed["b"]

    if obdim != OP:                        # sublane-align obs feature dim
        obs = jnp.pad(obs, ((0, 0), (0, OP - obdim)))

    TB = _batch_tile(B)
    grid = (B // TB,)
    cparams = pltpu.CompilerParams(dimension_semantics=("parallel",))

    w_spec = pl.BlockSpec((OP + 2 * WP, WP), lambda i: (0, 0))   # resident
    b_spec = pl.BlockSpec((3, WP), lambda i: (0, 0))             # resident
    obs_spec = pl.BlockSpec((TB, OP), lambda i: (i, 0))

    if deterministic:
        det = pl.pallas_call(
            partial(_deterministic_kernel, OP=OP, WP=WP, A=A),
            out_shape=jax.ShapeDtypeStruct((B, A), jnp.float32),
            grid=grid,
            in_specs=[obs_spec, w_spec, b_spec],
            out_specs=pl.BlockSpec((TB, A), lambda i: (i, 0)),
            compiler_params=cparams,
        )(obs, w, b)
        return det, None

    assert eps is not None, "stochastic path needs standard-normal noise eps"
    eps_spec = pl.BlockSpec((TB, A), lambda i: (i, 0))
    out = pl.pallas_call(
        partial(_stochastic_kernel, OP=OP, WP=WP, A=A),
        out_shape=jax.ShapeDtypeStruct((B, 2 * A), jnp.float32),
        grid=grid,
        in_specs=[obs_spec, eps_spec, w_spec, b_spec],
        out_specs=pl.BlockSpec((TB, 2 * A), lambda i: (i, 0)),
        compiler_params=cparams,
    )(obs, eps, w, b)

    act, logp = out[:, :A], out[:, A:]
    # Mirror torch's `mu.squeeze()`: no-op for B > 1, collapses to [A] for B == 1.
    if B == 1:
        act = jnp.squeeze(act, axis=0)
        logp = jnp.squeeze(logp, axis=0)
    return act, logp


# ----------------------------- params --------------------------------------


def init_params(key, obdim, h1, h2, actiondim):
    """Deterministic synthetic init (PyTorch-Linear-style uniform fan-in)."""
    def linear(k, fan_in, fan_out):
        k_w, k_b = jax.random.split(k)
        bound = 1.0 / math.sqrt(fan_in)
        w = jax.random.uniform(k_w, (fan_in, fan_out), jnp.float32, -bound, bound)
        b = jax.random.uniform(k_b, (1, fan_out), jnp.float32, -bound, bound)
        return w, b

    k1, k2, k3, k4 = jax.random.split(key, 4)
    w1, b1 = linear(k1, obdim, h1)
    w2, b2 = linear(k2, h1, h2)
    wmu, bmu = linear(k3, h2, actiondim)
    wls, bls = linear(k4, h2, actiondim)
    return dict(w1=w1, b1=b1, w2=w2, b2=b2,
                wmu=wmu, bmu=bmu, wls=wls, bls=bls)


def pack_params(params, obdim, h1, h2, A):
    """Zero-pad to lane-dense width and pack all weights/biases into 2 arrays.

    Layout (rows of the weight pack):
      [0,        OP)        : W1 (obdim x h1), zero-padded
      [OP,       OP+WP)     : W2 (h1 x h2),    zero-padded
      [OP+WP,    OP+2*WP)   : fused head, cols [0:A)=W_mu, [A:2A)=W_log_std
    Bias pack rows: 0 -> b1, 1 -> b2, 2 -> fused head bias.
    Zero padding is exact: padded columns stay 0 through ReLU, padded rows
    multiply zero activations, so results equal the unpadded network.
    """
    WP = _round_up(max(h1, h2, 2 * A), 128)
    OP = _round_up(obdim, 8)

    w = jnp.zeros((OP + 2 * WP, WP), jnp.float32)
    w = w.at[0:obdim, 0:h1].set(params["w1"])
    w = w.at[OP:OP + h1, 0:h2].set(params["w2"])
    w = w.at[OP + WP:OP + WP + h2, 0:A].set(params["wmu"])
    w = w.at[OP + WP:OP + WP + h2, A:2 * A].set(params["wls"])

    b = jnp.zeros((3, WP), jnp.float32)
    b = b.at[0, 0:h1].set(params["b1"][0])
    b = b.at[1, 0:h2].set(params["b2"][0])
    b = b.at[2, 0:A].set(params["bmu"][0])
    b = b.at[2, A:2 * A].set(params["bls"][0])

    return dict(w=w, b=b, A=A, OP=OP, WP=WP, obdim=obdim)


# ----------------------------- reference -----------------------------------


def reference_forward(obs, params, eps, deterministic):
    """Pure-JAX mirror of the PyTorch module (for validation)."""
    h = jax.nn.relu(obs @ params["w1"] + params["b1"])
    h = jax.nn.relu(h @ params["w2"] + params["b2"])
    mu = h @ params["wmu"] + params["bmu"]
    log_std = jnp.clip(h @ params["wls"] + params["bls"], MINLOGSTD, MAXLOGSTD)
    std = jnp.exp(log_std)
    if deterministic:
        return jnp.tanh(mu), None
    action = mu + std * eps
    z = (action - mu) / std
    log_prob = -0.5 * z * z - log_std - _HALF_LOG_2PI
    log_prob = log_prob - (_TWO_LOG_2 - action - jax.nn.softplus(-2.0 * action))
    return jnp.tanh(action), log_prob


# ----------------------------- demo ----------------------------------------


if __name__ == "__main__":
    # Small shapes consistent with the module: obs [B, obdim], MLP h1/h2, action dim A.
    B, OBDIM, H1, H2, A = 2, 16, 32, 32, 8

    key = jax.random.PRNGKey(0)
    k_params, k_obs, k_eps = jax.random.split(key, 3)

    params = init_params(k_params, OBDIM, H1, H2, A)
    packed = pack_params(params, OBDIM, H1, H2, A)     # done once, not per call
    obs = jax.random.normal(k_obs, (B, OBDIM), jnp.float32)
    eps = jax.random.normal(k_eps, (B, A), jnp.float32)  # rsample noise

    # stochastic path (default)
    action, log_prob = gaussian_actor_forward(obs, packed, eps, deterministic=False)
    jax.block_until_ready(action)
    jax.block_until_ready(log_prob)

    # deterministic path
    det_action, none_lp = gaussian_actor_forward(obs, packed, deterministic=True)
    jax.block_until_ready(det_action)
    assert none_lp is None
    assert action.shape == (B, A) and log_prob.shape == (B, A)
    assert det_action.shape == (B, A)

    # validate against the pure-JAX reference
    ref_act, ref_lp = reference_forward(obs, params, eps, deterministic=False)
    ref_det, _ = reference_forward(obs, params, eps, deterministic=True)
    assert jnp.allclose(action, ref_act, rtol=1e-5, atol=1e-5)
    assert jnp.allclose(log_prob, ref_lp, rtol=1e-5, atol=1e-5)
    assert jnp.allclose(det_action, ref_det, rtol=1e-5, atol=1e-5)

    print("KERNEL_OK")
</pallas_src>

<mosaic_0001>
module attributes {stable_mosaic.version = 11 : i64} {
  func.func @_stochastic_kernel(%arg0: i32, %arg1: memref<2x16xf32, #tpu.memory_space<vmem>>, %arg2: memref<2x8xf32, #tpu.memory_space<vmem>>, %arg3: memref<272x128xf32, #tpu.memory_space<vmem>>, %arg4: memref<3x128xf32, #tpu.memory_space<vmem>>, %arg5: memref<2x16xf32, #tpu.memory_space<vmem>>) attributes {dimension_semantics = [#tpu.dimension_semantics<parallel>], iteration_bounds = array<i64: 1>, scalar_prefetch = 0 : i64, scratch_operands = 0 : i64, tpu.core_type = #tpu.core_type<tc>, window_params = [{transform_indices = @transform_0, window_bounds = array<i64: 2, 16>}, {transform_indices = @transform_1, window_bounds = array<i64: 2, 8>}, {pipeline_mode = #tpu.pipeline_mode<synchronous>, transform_indices = @transform_2, window_bounds = array<i64: 272, 128>}, {pipeline_mode = #tpu.pipeline_mode<synchronous>, transform_indices = @transform_3, window_bounds = array<i64: 3, 128>}, {transform_indices = @transform_4, window_bounds = array<i64: 2, 16>}]} {
    %c0 = arith.constant 0 : index
    %c0_0 = arith.constant 0 : index
    %0 = vector.load %arg1[%c0, %c0_0] : memref<2x16xf32, #tpu.memory_space<vmem>>, vector<2x16xf32>
    %c0_1 = arith.constant 0 : index
    %c0_2 = arith.constant 0 : index
    %1 = vector.load %arg3[%c0_1, %c0_2] : memref<272x128xf32, #tpu.memory_space<vmem>>, vector<16x128xf32>
    %c16 = arith.constant 16 : index
    %c0_3 = arith.constant 0 : index
    %2 = vector.load %arg3[%c16, %c0_3] : memref<272x128xf32, #tpu.memory_space<vmem>>, vector<128x128xf32>
    %c144 = arith.constant 144 : index
    %c0_4 = arith.constant 0 : index
    %3 = vector.load %arg3[%c144, %c0_4] : memref<272x128xf32, #tpu.memory_space<vmem>>, vector<128x128xf32>
    %c0_5 = arith.constant 0 : index
    %c0_6 = arith.constant 0 : index
    %4 = vector.load %arg4[%c0_5, %c0_6] : memref<3x128xf32, #tpu.memory_space<vmem>>, vector<1x128xf32>
    %c1 = arith.constant 1 : index
    %c0_7 = arith.constant 0 : index
    %5 = vector.load %arg4[%c1, %c0_7] : memref<3x128xf32, #tpu.memory_space<vmem>>, vector<1x128xf32>
    %c2 = arith.constant 2 : index
    %c0_8 = arith.constant 0 : index
    %6 = vector.load %arg4[%c2, %c0_8] : memref<3x128xf32, #tpu.memory_space<vmem>>, vector<1x128xf32>
    %cst = arith.constant dense<0.000000e+00> : vector<2x128xf32>
    %7 = tpu.matmul %0, %1, %cst {dimension_numbers = #tpu.dot_dimension_numbers<[1], [0], [0], [1], [0, 0, 1, 1], [], []>} : vector<2x16xf32>, vector<16x128xf32>, vector<2x128xf32> -> vector<2x128xf32>
    %8 = vector.broadcast %4 : vector<1x128xf32> to vector<2x128xf32>
    %9 = arith.addf %7, %8 : vector<2x128xf32>
    %cst_9 = arith.constant 0.000000e+00 : f32
    %10 = vector.broadcast %cst_9 : f32 to vector<2x128xf32>
    %11 = arith.maximumf %9, %10 : vector<2x128xf32>
    %cst_10 = arith.constant dense<0.000000e+00> : vector<2x128xf32>
    %12 = tpu.matmul %11, %2, %cst_10 {dimension_numbers = #tpu.dot_dimension_numbers<[1], [0], [0], [1], [0, 0, 1, 1], [], []>} : vector<2x128xf32>, vector<128x128xf32>, vector<2x128xf32> -> vector<2x128xf32>
    %13 = vector.broadcast %5 : vector<1x128xf32> to vector<2x128xf32>
    %14 = arith.addf %12, %13 : vector<2x128xf32>
    %cst_11 = arith.constant 0.000000e+00 : f32
    %15 = vector.broadcast %cst_11 : f32 to vector<2x128xf32>
    %16 = arith.maximumf %14, %15 : vector<2x128xf32>
    %cst_12 = arith.constant dense<0.000000e+00> : vector<2x128xf32>
    %17 = tpu.matmul %16, %3, %cst_12 {dimension_numbers = #tpu.dot_dimension_numbers<[1], [0], [0], [1], [0, 0, 1, 1], [], []>} : vector<2x128xf32>, vector<128x128xf32>, vector<2x128xf32> -> vector<2x128xf32>
    %18 = vector.broadcast %6 : vector<1x128xf32> to vector<2x128xf32>
    %19 = arith.addf %17, %18 : vector<2x128xf32>
    %20 = vector.extract_strided_slice %19 {offsets = [0, 0], sizes = [2, 8], strides = [1, 1]} : vector<2x128xf32> to vector<2x8xf32>
    %21 = vector.extract_strided_slice %19 {offsets = [0, 8], sizes = [2, 8], strides = [1, 1]} : vector<2x128xf32> to vector<2x8xf32>
    %cst_13 = arith.constant -2.000000e+01 : f32
    %cst_14 = arith.constant 2.000000e+00 : f32
    %22 = vector.broadcast %cst_13 : f32 to vector<2x8xf32>
    %23 = arith.maximumf %22, %21 : vector<2x8xf32>
    %24 = vector.broadcast %cst_14 : f32 to vector<2x8xf32>
    %25 = arith.minimumf %24, %23 : vector<2x8xf32>
    %26 = math.exp %25 : vector<2x8xf32>
    %c0_15 = arith.constant 0 : index
    %c0_16 = arith.constant 0 : index
    %27 = vector.load %arg2[%c0_15, %c0_16] : memref<2x8xf32, #tpu.memory_space<vmem>>, vector<2x8xf32>
    %28 = arith.mulf %26, %27 : vector<2x8xf32>
    %29 = arith.addf %20, %28 : vector<2x8xf32>
    %cst_17 = arith.constant -5.000000e-01 : f32
    %30 = vector.broadcast %cst_17 : f32 to vector<2x8xf32>
    %31 = arith.mulf %30, %27 : vector<2x8xf32>
    %32 = arith.mulf %31, %27 : vector<2x8xf32>
    %33 = arith.subf %32, %25 : vector<2x8xf32>
    %cst_18 = arith.constant 0.918938517 : f32
    %34 = vector.broadcast %cst_18 : f32 to vector<2x8xf32>
    %35 = arith.subf %33, %34 : vector<2x8xf32>
    %cst_19 = arith.constant 1.38629436 : f32
    %36 = vector.broadcast %cst_19 : f32 to vector<2x8xf32>
    %37 = arith.subf %36, %29 : vector<2x8xf32>
    %cst_20 = arith.constant -2.000000e+00 : f32
    %38 = vector.broadcast %cst_20 : f32 to vector<2x8xf32>
    %39 = arith.mulf %38, %29 : vector<2x8xf32>
    %cst_21 = arith.constant 0.000000e+00 : f32
    %40 = vector.broadcast %cst_21 : f32 to vector<2x8xf32>
    %41 = arith.maximumf %39, %40 : vector<2x8xf32>
    %42 = vector.broadcast %cst_21 : f32 to vector<2x8xf32>
    %43 = arith.subf %39, %42 : vector<2x8xf32>
    %44 = arith.cmpf one, %43, %43 : vector<2x8xf32>
    %45 = vector.broadcast %cst_21 : f32 to vector<2x8xf32>
    %46 = arith.addf %39, %45 : vector<2x8xf32>
    %47 = math.absf %43 : vector<2x8xf32>
    %cst_22 = arith.constant 0.000000e+00 : f32
    %48 = vector.broadcast %cst_22 : f32 to vector<2x8xf32>
    %49 = arith.subf %48, %47 : vector<2x8xf32>
    %50 = math.exp %49 : vector<2x8xf32>
    %51 = math.log1p %50 : vector<2x8xf32>
    %52 = arith.addf %41, %51 : vector<2x8xf32>
    %53 = arith.select %44, %46, %52 : vector<2x8xi1>, vector<2x8xf32>
    %54 = arith.subf %37, %53 : vector<2x8xf32>
    %55 = arith.subf %35, %54 : vector<2x8xf32>
    %56 = math.tanh %29 : vector<2x8xf32>
    %c0_23 = arith.constant 0 : index
    %c0_24 = arith.constant 0 : index
    %57 = vector.load %arg5[%c0_23, %c0_24] : memref<2x16xf32, #tpu.memory_space<vmem>>, vector<2x8xf32>
    tpu.vector_store %arg5[%c0_23, %c0_24], %56 {strides = array<i32>} : memref<2x16xf32, #tpu.memory_space<vmem>>, vector<2x8xf32>,
    %c0_25 = arith.constant 0 : index
    %c8 = arith.constant 8 : index
    %58 = vector.load %arg5[%c0_25, %c8] : memref<2x16xf32, #tpu.memory_space<vmem>>, vector<2x8xf32>
    tpu.vector_store %arg5[%c0_25, %c8], %55 {strides = array<i32>} : memref<2x16xf32, #tpu.memory_space<vmem>>, vector<2x8xf32>,
    return
  }
  func.func @transform_0(%arg0: i32) -> (i32, i32) {
    %c0_i32 = arith.constant 0 : i32
    %c0_i32_0 = arith.constant 0 : i32
    return %arg0, %c0_i32 : i32, i32
  }
  func.func @transform_1(%arg0: i32) -> (i32, i32) {
    %c0_i32 = arith.constant 0 : i32
    %c0_i32_0 = arith.constant 0 : i32
    return %arg0, %c0_i32 : i32, i32
  }
  func.func @transform_2(%arg0: i32) -> (i32, i32) {
    %c0_i32 = arith.constant 0 : i32
    %c0_i32_0 = arith.constant 0 : i32
    %c0_i32_1 = arith.constant 0 : i32
    return %c0_i32, %c0_i32_0 : i32, i32
  }
  func.func @transform_3(%arg0: i32) -> (i32, i32) {
    %c0_i32 = arith.constant 0 : i32
    %c0_i32_0 = arith.constant 0 : i32
    %c0_i32_1 = arith.constant 0 : i32
    return %c0_i32, %c0_i32_0 : i32, i32
  }
  func.func @transform_4(%arg0: i32) -> (i32, i32) {
    %c0_i32 = arith.constant 0 : i32
    %c0_i32_0 = arith.constant 0 : i32
    return %arg0, %c0_i32 : i32, i32
  }
}

</mosaic_0001>

<llo_original>
// kernel: tpu_custom_call.1
$region0: #{tpu_custom_call.1}
  #allocation0 [shape = 'u32[]', space=smem, size = 0x4, offset = 0x4, fixed_abs, tag = 'smem constant byte address 0x4 - core index']
  #allocation1 [shape = 'u32[144,128]{1,0:T(1,128)}', space=vmem, size = 0x12000, scoped, tag = 'internal scratch']
  %s0 = inlined_call_operand.hbm [shape: f32[2,16], index: 0, kind: input, shape index: {}]
  %s1 = inlined_call_operand.vmem [shape: f32[2,8], index: 1, kind: input, shape index: {}]
  %s2 = inlined_call_operand.hbm [shape: f32[272,128], index: 2, kind: input, shape index: {}]
  %s3 = inlined_call_operand.vmem [shape: f32[3,128], index: 3, kind: input, shape index: {}]
  %s4 = inlined_call_operand.hbm [shape: f32[2,16], index: 4, kind: output, shape index: {}]
  %s5 = sld [smem:[#allocation0]]
  $region34: #{tpu_custom_call.1} parent=0
    _
  %s7 = ssub.s32 1, %s5
  %s8 = scalar_select 0, %s7, %s5
  $region1: #{tpu_custom_call.1} parent=0
    #allocation2 [shape = 'u8[1024]{0}', space=vmem, size = 0x400, scoped, tag = 'input window, operand 0, single buffered']
    #allocation3 [shape = 's32[1]{0}', space=sflag, size = 0x4, scoped, tag = 'scoped memory for tpu_custom_call.1']
    #allocation4 [shape = 's32[1]{0}', space=sflag, size = 0x4, scoped, tag = 'scoped memory for tpu_custom_call.1']
    #allocation5 [shape = 'u8[139264]{0}', space=vmem, size = 0x22000, scoped, tag = 'input window, operand 2, single buffered']
    #allocation6 [shape = 's32[1]{0}', space=sflag, size = 0x4, scoped, tag = 'scoped memory for tpu_custom_call.1']
    #allocation7 [shape = 'u8[1024]{0}', space=vmem, size = 0x400, scoped, tag = 'output window, operand 0, single buffered']
    %9 = vsyncpa [#allocation3], 0
    %10 = vsyncpa [#allocation6], 0
    %11 = vsyncpa [#allocation4], 0
    // Predicated region
    $region2: #{tpu_custom_call.1} parent=1 // pred_check
      _
    $region3: #{tpu_custom_call.1} parent=1 // pred_check_branch
      %13 = sbr.rel (0) target = $region5
    $region4: #{tpu_custom_call.1} parent=1 // pred_region
      %s15 = ssub.s32 32, 32
      %16 = vsyncadd [#allocation3], %s15
      %s18 = sshll.u32 [#allocation2], 4
      %s19 = int_to_ptr.vmem [resolvable:$true] %s18
      %21 = dma.hbm_to_vmem [thread:$0]  %s0, 32, %s19, [#allocation3]
    $region5: #{tpu_custom_call.1} parent=1 // pred_fallthru
      _
    // Predicated region
    $region6: #{tpu_custom_call.1} parent=1 // pred_check
      _
    $region7: #{tpu_custom_call.1} parent=1 // pred_check_branch
      %23 = sbr.rel (0) target = $region9
    $region8: #{tpu_custom_call.1} parent=1 // pred_region
      _
    $region9: #{tpu_custom_call.1} parent=1 // pred_fallthru
      _
    // Predicated region
    $region10: #{tpu_custom_call.1} parent=1 // pred_check
      _
    $region11: #{tpu_custom_call.1} parent=1 // pred_check_branch
      %25 = sbr.rel (0) target = $region13
    $region12: #{tpu_custom_call.1} parent=1 // pred_region
      %s27 = ssub.s32 4352, 4352
      %28 = vsyncadd [#allocation6], %s27
      %s29 = sshll.u32 [#allocation5], 4
      %s30 = int_to_ptr.vmem [resolvable:$true] %s29
      %35 = dma.hbm_to_vmem [thread:$0]  %s2, 4352, %s30, [#allocation6], 128, 128, 8
    $region13: #{tpu_custom_call.1} parent=1 // pred_fallthru
      _
    // Predicated region
    $region14: #{tpu_custom_call.1} parent=1 // pred_check
      _
    $region15: #{tpu_custom_call.1} parent=1 // pred_check_branch
      %37 = sbr.rel (0) target = $region17
    $region16: #{tpu_custom_call.1} parent=1 // pred_region
      _
    $region17: #{tpu_custom_call.1} parent=1 // pred_fallthru
      _
    // Predicated region
    $region18: #{tpu_custom_call.1} parent=1 // pred_check
      _
    $region19: #{tpu_custom_call.1} parent=1 // pred_check_branch
      %39 = sbr.rel (0) target = $region21
    $region20: #{tpu_custom_call.1} parent=1 // pred_region
      %40 = dma.done [#allocation3], 32
    $region21: #{tpu_custom_call.1} parent=1 // pred_fallthru
      _
    // Predicated region
    $region22: #{tpu_custom_call.1} parent=1 // pred_check
      _
    $region23: #{tpu_custom_call.1} parent=1 // pred_check_branch
      %42 = sbr.rel (0) target = $region25
    $region24: #{tpu_custom_call.1} parent=1 // pred_region
      %43 = dma.done [#allocation6], 4352
    $region25: #{tpu_custom_call.1} parent=1 // pred_fallthru
      _
    %v44 = vld [vmem:[#allocation2] sm:$0x3]
    %v45 = vld [vmem:[#allocation5] sm:$0xff]
    %v46 = vld [vmem:[#allocation5 + $0x8] sm:$0xff]
    %v47 = vld [vmem:[#allocation5 + $0x10] sm:$0xff]
    %v48 = vld [vmem:[#allocation5 + $0x18] sm:$0xff]
    %v49 = vld [vmem:[#allocation5 + $0x20] sm:$0xff]
    %v50 = vld [vmem:[#allocation5 + $0x28] sm:$0xff]
    %v51 = vld [vmem:[#allocation5 + $0x30] sm:$0xff]
    %v52 = vld [vmem:[#allocation5 + $0x38] sm:$0xff]
    %v53 = vld [vmem:[#allocation5 + $0x40] sm:$0xff]
    %v54 = vld [vmem:[#allocation5 + $0x48] sm:$0xff]
    %v55 = vld [vmem:[#allocation5 + $0x50] sm:$0xff]
    %v56 = vld [vmem:[#allocation5 + $0x58] sm:$0xff]
    %v57 = vld [vmem:[#allocation5 + $0x60] sm:$0xff]
    %v58 = vld [vmem:[#allocation5 + $0x68] sm:$0xff]
    %v59 = vld [vmem:[#allocation5 + $0x70] sm:$0xff]
    %v60 = vld [vmem:[#allocation5 + $0x78] sm:$0xff]
    %v61 = vld [vmem:[#allocation5 + $0x80] sm:$0xff]
    %v62 = vld [vmem:[#allocation5 + $0x88] sm:$0xff]
    %v63 = vld [vmem:[#allocation5 + $0x90] sm:$0xff]
    %v64 = vld [vmem:[#allocation5 + $0x98] sm:$0xff]
    %v65 = vld [vmem:[#allocation5 + $0xa0] sm:$0xff]
    %v66 = vld [vmem:[#allocation5 + $0xa8] sm:$0xff]
    %v67 = vld [vmem:[#allocation5 + $0xb0] sm:$0xff]
    %v68 = vld [vmem:[#allocation5 + $0xb8] sm:$0xff]
    %v69 = vld [vmem:[#allocation5 + $0xc0] sm:$0xff]
    %v70 = vld [vmem:[#allocation5 + $0xc8] sm:$0xff]
    %v71 = vld [vmem:[#allocation5 + $0xd0] sm:$0xff]
    %v72 = vld [vmem:[#allocation5 + $0xd8] sm:$0xff]
    %v73 = vld [vmem:[#allocation5 + $0xe0] sm:$0xff]
    %v74 = vld [vmem:[#allocation5 + $0xe8] sm:$0xff]
    %v75 = vld [vmem:[#allocation5 + $0xf0] sm:$0xff]
    %v76 = vld [vmem:[#allocation5 + $0xf8] sm:$0xff]
    %v77 = vld [vmem:[#allocation5 + $0x100] sm:$0xff]
    %v78 = vld [vmem:[#allocation5 + $0x108] sm:$0xff]
    %v79 = vld [vmem:[%s3] sm:$0x1]
    %v80 = vld [vmem:[%s3 + $0x1] sm:$0x1]
    %v81 = vld [vmem:[%s3 + $0x2] sm:$0x1]
    %v82 = vlaneseq
    %v83 = vshrl.u32 %v82, 7
    %v84 = vsub.s32 0, %v83
    %v85 = vrot.slane %v79, %v84
    %vm86 = vcmask 130048
    %v88 = vsel %vm86, %v44, 0
    %90 = vmatprep.subr.mxu0 0.0
    %91 = vmatpush1.msra.mxu0 %v45
    %92 = vmatprep.subr.mxu0 0.0
    %93 = vmatpush1.msra.mxu0 %v46
    %94 = vmatprep.subr.mxu0 0.0
    %95 = vmatpush1.msra.mxu0 0.0
    %96 = vmatprep.subr.mxu0 0.0
    %97 = vmatpush1.msra.mxu0 0.0
    %98 = vmatprep.subr.mxu0 0.0
    %99 = vmatpush1.msra.mxu0 0.0
    %100 = vmatprep.subr.mxu0 0.0
    %101 = vmatpush1.msra.mxu0 0.0
    %102 = vmatprep.subr.mxu0 0.0
    %103 = vmatpush1.msra.mxu0 0.0
    %104 = vmatprep.subr.mxu0 0.0
    %105 = vmatpush1.msra.mxu0 0.0
    %106 = vmatprep.subr.mxu0 0.0
    %107 = vmatpush1.msra.mxu0 0.0
    %108 = vmatprep.subr.mxu0 0.0
    %109 = vmatpush1.msra.mxu0 0.0
    %110 = vmatprep.subr.mxu0 0.0
    %111 = vmatpush1.msra.mxu0 0.0
    %112 = vmatprep.subr.mxu0 0.0
    %113 = vmatpush1.msra.mxu0 0.0
    %114 = vmatprep.subr.mxu0 0.0
    %115 = vmatpush1.msra.mxu0 0.0
    %116 = vmatprep.subr.mxu0 0.0
    %117 = vmatpush1.msra.mxu0 0.0
    %118 = vmatprep.subr.mxu0 0.0
    %119 = vmatpush1.msra.mxu0 0.0
    %120 = vmatprep.subr.mxu0 0.0
    %121 = vmatpush1.msra.mxu0 0.0
    %122 = vmatprep.subr.mxu0 0.0
    %123 = vmatpush1.msra.mxu0 0.0
    %124 = vmatprep.subr.mxu0 0.0
    %125 = vmatpush1.msra.mxu0 0.0
    %126 = vmatprep.subr.mxu0 0.0
    %127 = vmatpush1.msra.mxu0 0.0
    %128 = vmatprep.subr.mxu0 0.0
    %129 = vmatpush1.msra.mxu0 0.0
    %130 = vmatprep.subr.mxu0 0.0
    %131 = vmatpush1.msra.mxu0 0.0
    %132 = vmatprep.subr.mxu0 0.0
    %133 = vmatpush1.msra.mxu0 0.0
    %134 = vmatprep.subr.mxu0 0.0
    %135 = vmatpush1.msra.mxu0 0.0
    %136 = vmatprep.subr.mxu0 0.0
    %137 = vmatpush1.msra.mxu0 0.0
    %138 = vmatprep.subr.mxu0 0.0
    %139 = vmatpush1.msra.mxu0 0.0
    %140 = vmatprep.subr.mxu0 0.0
    %141 = vmatpush1.msra.mxu0 0.0
    %142 = vmatprep.subr.mxu0 0.0
    %143 = vmatpush1.msra.mxu0 0.0
    %144 = vmatprep.subr.mxu0 0.0
    %145 = vmatpush1.msra.mxu0 0.0
    %146 = vmatprep.subr.mxu0 0.0
    %147 = vmatpush1.msra.mxu0 0.0
    %148 = vmatprep.subr.mxu0 0.0
    %149 = vmatpush1.msra.mxu0 0.0
    %150 = vmatprep.subr.mxu0 0.0
    %151 = vmatpush1.msra.mxu0 0.0
    %152 = vmatprep.subr.mxu0 0.0
    %153 = vmatpush1.msra.mxu0 0.0
    %154 = vmatprep.mubr.f32.mxu0 0.0
    %155 = vmatmul.mubr.f32.gmra.mrb[0].mxu0 %v88
    %v156 = vpop.f32.mrb[0].mxu0
    %v157 = vadd.f32 %v85, %v156
    %v158 = vpop.f32.mrb[0].mxu0
    %159 = vdwg.mxu0
    %v160 = vmax.f32 %v157, 0.0
    %v161 = vlaneseq
    %v162 = vshrl.u32 %v161, 7
    %v163 = vsub.s32 0, %v162
    %v164 = vrot.slane %v80, %v163
    %165 = vmatprep.subr.mxu0 0.0
    %166 = vmatpush1.msra.mxu0 %v47
    %167 = vmatprep.subr.mxu0 0.0
    %168 = vmatpush1.msra.mxu0 %v48
    %169 = vmatprep.subr.mxu0 0.0
    %170 = vmatpush1.msra.mxu0 %v49
    %171 = vmatprep.subr.mxu0 0.0
    %172 = vmatpush1.msra.mxu0 %v50
    %173 = vmatprep.subr.mxu0 0.0
    %174 = vmatpush1.msra.mxu0 %v51
    %175 = vmatprep.subr.mxu0 0.0
    %176 = vmatpush1.msra.mxu0 %v52
    %177 = vmatprep.subr.mxu0 0.0
    %178 = vmatpush1.msra.mxu0 %v53
    %179 = vmatprep.subr.mxu0 0.0
    %180 = vmatpush1.msra.mxu0 %v54
    %181 = vmatprep.subr.mxu0 0.0
    %182 = vmatpush1.msra.mxu0 %v55
    %183 = vmatprep.subr.mxu0 0.0
    %184 = vmatpush1.msra.mxu0 %v56
    %185 = vmatprep.subr.mxu0 0.0
    %186 = vmatpush1.msra.mxu0 %v57
    %187 = vmatprep.subr.mxu0 0.0
    %188 = vmatpush1.msra.mxu0 %v58
    %189 = vmatprep.subr.mxu0 0.0
    %190 = vmatpush1.msra.mxu0 %v59
    %191 = vmatprep.subr.mxu0 0.0
    %192 = vmatpush1.msra.mxu0 %v60
    %193 = vmatprep.subr.mxu0 0.0
    %194 = vmatpush1.msra.mxu0 %v61
    %195 = vmatprep.subr.mxu0 0.0
    %196 = vmatpush1.msra.mxu0 %v62
    %197 = vmatprep.subr.mxu0 0.0
    %198 = vmatpush1.msra.mxu0 0.0
    %199 = vmatprep.subr.mxu0 0.0
    %200 = vmatpush1.msra.mxu0 0.0
    %201 = vmatprep.subr.mxu0 0.0
    %202 = vmatpush1.msra.mxu0 0.0
    %203 = vmatprep.subr.mxu0 0.0
    %204 = vmatpush1.msra.mxu0 0.0
    %205 = vmatprep.subr.mxu0 0.0
    %206 = vmatpush1.msra.mxu0 0.0
    %207 = vmatprep.subr.mxu0 0.0
    %208 = vmatpush1.msra.mxu0 0.0
    %209 = vmatprep.subr.mxu0 0.0
    %210 = vmatpush1.msra.mxu0 0.0
    %211 = vmatprep.subr.mxu0 0.0
    %212 = vmatpush1.msra.mxu0 0.0
    %213 = vmatprep.subr.mxu0 0.0
    %214 = vmatpush1.msra.mxu0 0.0
    %215 = vmatprep.subr.mxu0 0.0
    %216 = vmatpush1.msra.mxu0 0.0
    %217 = vmatprep.subr.mxu0 0.0
    %218 = vmatpush1.msra.mxu0 0.0
    %219 = vmatprep.subr.mxu0 0.0
    %220 = vmatpush1.msra.mxu0 0.0
    %221 = vmatprep.subr.mxu0 0.0
    %222 = vmatpush1.msra.mxu0 0.0
    %223 = vmatprep.subr.mxu0 0.0
    %224 = vmatpush1.msra.mxu0 0.0
    %225 = vmatprep.subr.mxu0 0.0
    %226 = vmatpush1.msra.mxu0 0.0
    %227 = vmatprep.subr.mxu0 0.0
    %228 = vmatpush1.msra.mxu0 0.0
    %229 = vmatprep.mubr.f32.mxu0 0.0
    %230 = vmatmul.mubr.f32.gmra.mrb[0].mxu0 %v160
    %v231 = vpop.f32.mrb[0].mxu0
    %v232 = vadd.f32 %v164, %v231
    %v233 = vpop.f32.mrb[0].mxu0
    %234 = vdwg.mxu0
    %v235 = vmax.f32 %v232, 0.0
    %v236 = vlaneseq
    %v237 = vshrl.u32 %v236, 7
    %v238 = vsub.s32 0, %v237
    %v239 = vrot.slane %v81, %v238
    %240 = vmatprep.subr.mxu0 0.0
    %241 = vmatpush1.msra.mxu0 %v63
    %242 = vmatprep.subr.mxu0 0.0
    %243 = vmatpush1.msra.mxu0 %v64
    %244 = vmatprep.subr.mxu0 0.0
    %245 = vmatpush1.msra.mxu0 %v65
    %246 = vmatprep.subr.mxu0 0.0
    %247 = vmatpush1.msra.mxu0 %v66
    %248 = vmatprep.subr.mxu0 0.0
    %249 = vmatpush1.msra.mxu0 %v67
    %250 = vmatprep.subr.mxu0 0.0
    %251 = vmatpush1.msra.mxu0 %v68
    %252 = vmatprep.subr.mxu0 0.0
    %253 = vmatpush1.msra.mxu0 %v69
    %254 = vmatprep.subr.mxu0 0.0
    %255 = vmatpush1.msra.mxu0 %v70
    %256 = vmatprep.subr.mxu0 0.0
    %257 = vmatpush1.msra.mxu0 %v71
    %258 = vmatprep.subr.mxu0 0.0
    %259 = vmatpush1.msra.mxu0 %v72
    %260 = vmatprep.subr.mxu0 0.0
    %261 = vmatpush1.msra.mxu0 %v73
    %262 = vmatprep.subr.mxu0 0.0
    %263 = vmatpush1.msra.mxu0 %v74
    %264 = vmatprep.subr.mxu0 0.0
    %265 = vmatpush1.msra.mxu0 %v75
    %266 = vmatprep.subr.mxu0 0.0
    %267 = vmatpush1.msra.mxu0 %v76
    %268 = vmatprep.subr.mxu0 0.0
    %269 = vmatpush1.msra.mxu0 %v77
    %270 = vmatprep.subr.mxu0 0.0
    %271 = vmatpush1.msra.mxu0 %v78
    %272 = vmatprep.subr.mxu0 0.0
    %273 = vmatpush1.msra.mxu0 0.0
    %274 = vmatprep.subr.mxu0 0.0
    %275 = vmatpush1.msra.mxu0 0.0
    %276 = vmatprep.subr.mxu0 0.0
    %277 = vmatpush1.msra.mxu0 0.0
    %278 = vmatprep.subr.mxu0 0.0
    %279 = vmatpush1.msra.mxu0 0.0
    %280 = vmatprep.subr.mxu0 0.0
    %281 = vmatpush1.msra.mxu0 0.0
    %282 = vmatprep.subr.mxu0 0.0
    %283 = vmatpush1.msra.mxu0 0.0
    %284 = vmatprep.subr.mxu0 0.0
    %285 = vmatpush1.msra.mxu0 0.0
    %286 = vmatprep.subr.mxu0 0.0
    %287 = vmatpush1.msra.mxu0 0.0
    %288 = vmatprep.subr.mxu0 0.0
    %289 = vmatpush1.msra.mxu0 0.0
    %290 = vmatprep.subr.mxu0 0.0
    %291 = vmatpush1.msra.mxu0 0.0
    %292 = vmatprep.subr.mxu0 0.0
    %293 = vmatpush1.msra.mxu0 0.0
    %294 = vmatprep.subr.mxu0 0.0
    %295 = vmatpush1.msra.mxu0 0.0
    %296 = vmatprep.subr.mxu0 0.0
    %297 = vmatpush1.msra.mxu0 0.0
    %298 = vmatprep.subr.mxu0 0.0
    %299 = vmatpush1.msra.mxu0 0.0
    %300 = vmatprep.subr.mxu0 0.0
    %301 = vmatpush1.msra.mxu0 0.0
    %302 = vmatprep.subr.mxu0 0.0
    %303 = vmatpush1.msra.mxu0 0.0
    %304 = vmatprep.mubr.f32.mxu0 0.0
    %305 = vmatmul.mubr.f32.gmra.mrb[0].mxu0 %v235
    %v306 = vpop.f32.mrb[0].mxu0
    %v307 = vadd.f32 %v239, %v306
    %v308 = vpop.f32.mrb[0].mxu0
    %309 = vdwg.mxu0
    %v310 = vmax.f32 %v307, -20.0
    %v311 = vmin.f32 %v310, 2.0
    %v312 = vmul.f32 %v311, 1.442695
    %v313 = vpow.pop %v312
    %v314 = vld [vmem:[%s1] sm:$0x3]
    %316 = vrot.lane.b32.xlu0 %v314, 8
    %v317 = vpop.permute.xlu0 %316
    %v319 = vmul.f32 %v313, %v317
    %321 = vrot.lane.b32.xlu0 %v319, 120
    %v322 = vpop.permute.xlu0 %321
    %v324 = vadd.f32 %v307, %v322
    %v325 = vmul.f32 %v314, -0.5
    %v326 = vmul.f32 %v325, %v314
    %328 = vrot.lane.b32.xlu0 %v311, 120
    %v329 = vpop.permute.xlu0 %328
    %v331 = vsub.f32 %v326, %v329
    %v332 = vsub.f32 %v331, 0.9189385
    %v333 = vsub.f32 1.3862944, %v324
    %v334 = vmul.f32 %v324, -2.0
    %v335 = vmax.f32 %v334, 0.0
    %vm336 = vcmp.ne.f32.partialorder %v334, %v334
    %v337 = vadd.f32 %v334, 0.0
    %v338 = vand.u32 2147483647, %v334
    %v339 = vsub.f32 0.0, %v338
    %v340 = vmul.f32 %v339, 1.442695
    %v341 = vpow.pop %v340
    %v342 = vadd.f32 %v341, 1.0
    %v343 = vlog2.pop %v342
    %v344 = vmul.f32 %v343, 0.6931472
    %v345 = vmul.f32 -0.5, %v341
    %v346 = vadd.f32 %v345, 1.0
    %v347 = vmul.f32 %v346, %v341
    %v348 = vand.u32 2147483647, %v341
    %vm349 = vcmp.lt.f32.partialorder %v348, 0.0004427343
    %v350 = vsel %vm349, %v347, %v344
    %v351 = vadd.f32 %v335, %v350
    %v352 = vsel %vm336, %v337, %v351
    %v353 = vsub.f32 %v333, %v352
    %v354 = vsub.f32 %v332, %v353
    %v355 = vtanh.pop %v324
    %vm356 = vcmask 58368
    %357 = vst.msk [vmem:[#allocation7] sm:$0x3] %vm356, %v355
    %359 = vrot.lane.b32.xlu0 %v354, 8
    %v360 = vpop.permute.xlu0 %359
    %vm362 = vcmask 123968
    %363 = vst.msk [vmem:[#allocation7] sm:$0x3] %vm362, %v360
    // Predicated region
    $region26: #{tpu_custom_call.1} parent=1 // pred_check
      _
    $region27: #{tpu_custom_call.1} parent=1 // pred_check_branch
      %365 = sbr.rel (0) target = $region29
    $region28: #{tpu_custom_call.1} parent=1 // pred_region
      %s367 = ssub.s32 32, 32
      %368 = vsyncadd [#allocation4], %s367
      %s370 = sshll.u32 [#allocation7], 4
      %s371 = int_to_ptr.vmem [resolvable:$true] %s370
      %373 = dma.vmem_to_hbm [thread:$0]  %s371, 32, %s4, [#allocation4]
    $region29: #{tpu_custom_call.1} parent=1 // pred_fallthru
      _
    // Predicated region
    $region30: #{tpu_custom_call.1} parent=1 // pred_check
      _
    $region31: #{tpu_custom_call.1} parent=1 // pred_check_branch
      %375 = sbr.rel (0) target = $region33
    $region32: #{tpu_custom_call.1} parent=1 // pred_region
      %376 = dma.done [#allocation4], 32
    $region33: #{tpu_custom_call.1} parent=1 // pred_fallthru
      _
    %377 = vsyncpa [#allocation3], 1
    %378 = vsyncpa [#allocation6], 1
    %379 = vsyncpa [#allocation4], 1

</llo_original>
